<compile_context>
chip_gen: v5e
topology: v5e:2x2
jax: 0.10.0
libtpu: 0.0.40
codegen_flags: <defaults>
</compile_context>

<pallas_src>
import math

import jax
import jax.numpy as jnp
from jax.experimental import pallas as pl
from jax.experimental.pallas import tpu as pltpu


# ------------------------------- fused kernel --------------------------------


def _gcn_v_kernel(x_ref, adj_ref, xw2_ref, w1_ref, b_ref,
                  cw1_ref, cb1_ref, alpha_ref, cw2_ref, cb2_ref,
                  o_ref, acc_ref):
    """Grid = (row_tiles, k_tiles); k (adj column / reduction axis) innermost."""
    f32 = jnp.float32
    bf16 = jnp.bfloat16
    k = pl.program_id(1)

    @pl.when(k == 0)
    def _init():
        # Self half of the GraphConv weight:  X_rows @ W[:D]  (once per row tile).
        acc_ref[...] = jnp.dot(x_ref[...], w1_ref[...],
                               preferred_element_type=f32)

    # Aggregate half, K-tiled:  A_rows,k @ (X @ W[D:])_k   accumulated in f32.
    acc_ref[...] += jnp.dot(adj_ref[...].astype(bf16), xw2_ref[...],
                            preferred_element_type=f32)

    @pl.when(k == pl.num_programs(1) - 1)
    def _finalize():
        # GraphConv bias + ReLU, then fused classifier Linear->PReLU->Linear.
        h = jnp.maximum(acc_ref[...] + b_ref[...], 0.0)
        z = jnp.dot(h.astype(bf16), cw1_ref[...],
                    preferred_element_type=f32) + cb1_ref[...]
        z = jnp.where(z >= 0.0, z, alpha_ref[...] * z)
        # cw2 / cb2 are lane-padded to a multiple of 128 -> unmasked stores.
        o_ref[...] = jnp.dot(z.astype(bf16), cw2_ref[...],
                             preferred_element_type=f32) + cb2_ref[...]


# ------------------------------- host wrapper --------------------------------


def _round_up(a, m):
    return ((a + m - 1) // m) * m


def _vmem_limit_bytes():
    # Raise the scoped-VMEM limit (defaults: 16 MiB v5e / 32 MiB v6e,v7x) while
    # leaving headroom; capped so it also fits v7x's 64 MiB physical VMEM.
    try:
        cap = pltpu.get_tpu_info().vmem_capacity_bytes
    except Exception:
        cap = 64 * 1024 * 1024
    return int(min(cap * 3 // 4, 100 * 1024 * 1024))


def gcn_v_forward(params, x, adj, *, row_block=512, k_block=1024):
    """GCN_V.forward (default path): returns pred.view(-1), shape (N*nclass,)."""
    n, d = x.shape
    nhid = params["conv_w"].shape[1]
    nclass = params["cls_w2"].shape[1]

    # cat([X, A@X], -1) @ W == X @ W[:D] + (A @ X) @ W[D:] == X@W1 + A @ (X@W2)
    w1 = params["conv_w"][:d].astype(jnp.bfloat16)
    w2 = params["conv_w"][d:]
    xw2 = (x @ w2).astype(jnp.bfloat16)          # hoisted once (tiny matmul)

    # ---- static tile sizes + zero padding so every block divides exactly ----
    row_block = max(128, _round_up(row_block, 128))
    k_block = max(128, _round_up(k_block, 128))
    row_block = min(row_block, _round_up(n, 128))
    k_block = min(k_block, _round_up(n, 128))
    np_rows = _round_up(n, row_block)            # padded adj rows / out rows
    np_cols = _round_up(n, k_block)              # padded adj cols (reduction)
    nclass_p = _round_up(nclass, 128)            # lane-dense output width

    x_p = x.astype(jnp.bfloat16)
    if np_rows != n:
        x_p = jnp.pad(x_p, ((0, np_rows - n), (0, 0)))
    if np_cols != n:
        xw2 = jnp.pad(xw2, ((0, np_cols - n), (0, 0)))
    if (np_rows, np_cols) != (n, n):
        adj = jnp.pad(adj, ((0, np_rows - n), (0, np_cols - n)))

    b = params["conv_b"].reshape(1, nhid).astype(jnp.float32)
    cw1 = params["cls_w1"].astype(jnp.bfloat16)
    cb1 = params["cls_b1"].reshape(1, nhid).astype(jnp.float32)
    alpha = params["cls_alpha"].reshape(1, nhid).astype(jnp.float32)
    cw2 = params["cls_w2"].astype(jnp.bfloat16)
    cb2 = params["cls_b2"].reshape(1, nclass).astype(jnp.float32)
    if nclass_p != nclass:
        cw2 = jnp.pad(cw2, ((0, 0), (0, nclass_p - nclass)))
        cb2 = jnp.pad(cb2, ((0, 0), (0, nclass_p - nclass)))

    vmem = pl.BlockSpec(memory_space=pltpu.MemorySpace.VMEM)
    grid = (np_rows // row_block, np_cols // k_block)

    out = pl.pallas_call(
        _gcn_v_kernel,
        out_shape=jax.ShapeDtypeStruct((np_rows, nclass_p), jnp.float32),
        grid=grid,
        in_specs=[
            pl.BlockSpec((row_block, d), lambda i, k: (i, 0)),        # x rows
            pl.BlockSpec((row_block, k_block), lambda i, k: (i, k)),  # adj tile
            pl.BlockSpec((k_block, nhid), lambda i, k: (k, 0)),       # xw2 tile
            vmem, vmem, vmem, vmem, vmem, vmem, vmem,                 # params
        ],
        out_specs=pl.BlockSpec((row_block, nclass_p), lambda i, k: (i, 0)),
        scratch_shapes=[pltpu.VMEM((row_block, nhid), jnp.float32)],
        compiler_params=pltpu.CompilerParams(
            dimension_semantics=("parallel", "arbitrary"),
            vmem_limit_bytes=_vmem_limit_bytes(),
        ),
    )(x_p, adj, xw2, w1, b, cw1, cb1, alpha, cw2, cb2)

    return out[:n, :nclass].reshape(-1)          # pred.view(-1)


# --------------------------- params / reference ------------------------------


def init_gcn_v_params(key, feature_dim, nhid, nclass):
    ks = jax.random.split(key, 5)

    def xavier(k, shape):
        bound = math.sqrt(6.0 / (shape[0] + shape[1]))
        return jax.random.uniform(k, shape, jnp.float32, -bound, bound)

    def linear(kw, kb, fan_in, fan_out):
        bound = 1.0 / math.sqrt(fan_in)
        w = jax.random.uniform(kw, (fan_in, fan_out), jnp.float32, -bound, bound)
        b_ = jax.random.uniform(kb, (fan_out,), jnp.float32, -bound, bound)
        return w, b_

    cls_w1, cls_b1 = linear(ks[1], ks[2], nhid, nhid)
    cls_w2, cls_b2 = linear(ks[3], ks[4], nhid, nclass)
    return {
        "conv_w": xavier(ks[0], (feature_dim * 2, nhid)),   # GraphConv weight
        "conv_b": jnp.zeros((nhid,), jnp.float32),          # init.constant_(0)
        "cls_w1": cls_w1, "cls_b1": cls_b1,
        "cls_alpha": jnp.full((nhid,), 0.25, jnp.float32),  # PReLU default
        "cls_w2": cls_w2, "cls_b2": cls_b2,
    }


def gcn_v_reference(params, x, adj):
    """Pure-JAX f32 reference of GCN_V.forward (default path)."""
    agg = adj @ x
    cat = jnp.concatenate([x, agg], axis=-1)
    h = jnp.maximum(cat @ params["conv_w"] + params["conv_b"], 0.0)
    z = h @ params["cls_w1"] + params["cls_b1"]
    z = jnp.where(z >= 0.0, z, params["cls_alpha"] * z)
    out = z @ params["cls_w2"] + params["cls_b2"]
    return out.reshape(-1)


# ----------------------------------- main ------------------------------------


if __name__ == "__main__":
    key = jax.random.PRNGKey(0)
    fwd = jax.jit(gcn_v_forward, static_argnames=("row_block", "k_block"))

    # ---- Case 1: tiny graph (matches the original test shapes) ----
    N, FEATURE_DIM, NHID, NCLASS = 16, 32, 32, 1
    k_param, k_x, k_a, k2 = jax.random.split(key, 4)
    params = init_gcn_v_params(k_param, FEATURE_DIM, NHID, NCLASS)
    x = jax.random.normal(k_x, (N, FEATURE_DIM), jnp.float32)
    a_raw = jax.random.uniform(k_a, (N, N), jnp.float32)
    adj = a_raw / jnp.sum(a_raw, axis=-1, keepdims=True)    # mean-like dense A

    pred = fwd(params, x, adj)
    jax.block_until_ready(pred)
    assert pred.shape == (N * NCLASS,)
    assert bool(jnp.all(jnp.isfinite(pred)))
    ref = gcn_v_reference(params, x, adj)
    assert bool(jnp.allclose(pred, ref, atol=5e-2, rtol=5e-2))

    # ---- Case 2: non-divisible N, multi-tile row+K grid, nclass > 1 ----
    N2, NHID2, NCLASS2 = 384, 64, 3
    k_param2, k_x2, k_a2 = jax.random.split(k2, 3)
    params2 = init_gcn_v_params(k_param2, FEATURE_DIM, NHID2, NCLASS2)
    x2 = jax.random.normal(k_x2, (N2, FEATURE_DIM), jnp.float32)
    a2 = jax.random.uniform(k_a2, (N2, N2), jnp.float32)
    adj2 = a2 / jnp.sum(a2, axis=-1, keepdims=True)

    pred2 = fwd(params2, x2, adj2, row_block=256, k_block=256)
    jax.block_until_ready(pred2)
    assert pred2.shape == (N2 * NCLASS2,)
    ref2 = gcn_v_reference(params2, x2, adj2)
    assert bool(jnp.allclose(pred2, ref2, atol=5e-2, rtol=5e-2))

    print("KERNEL_OK")
</pallas_src>

<mosaic_0001>
module attributes {stable_mosaic.version = 11 : i64} {
  func.func @_gcn_v_kernel(%arg0: i32, %arg1: i32, %arg2: memref<128x32xbf16, #tpu.memory_space<vmem>>, %arg3: memref<128x128xf32, #tpu.memory_space<vmem>>, %arg4: memref<128x32xbf16, #tpu.memory_space<vmem>>, %arg5: memref<32x32xbf16, #tpu.memory_space<vmem>>, %arg6: memref<1x32xf32, #tpu.memory_space<vmem>>, %arg7: memref<32x32xbf16, #tpu.memory_space<vmem>>, %arg8: memref<1x32xf32, #tpu.memory_space<vmem>>, %arg9: memref<1x32xf32, #tpu.memory_space<vmem>>, %arg10: memref<32x128xbf16, #tpu.memory_space<vmem>>, %arg11: memref<1x128xf32, #tpu.memory_space<vmem>>, %arg12: memref<128x128xf32, #tpu.memory_space<vmem>>, %arg13: memref<128x32xf32, #tpu.memory_space<vmem>>) attributes {dimension_semantics = [#tpu.dimension_semantics<parallel>, #tpu.dimension_semantics<arbitrary>], iteration_bounds = array<i64: 1, 1>, scalar_prefetch = 0 : i64, scratch_operands = 1 : i64, tpu.core_type = #tpu.core_type<tc>, window_params = [{transform_indices = @transform_0, window_bounds = array<i64: 128, 32>}, {transform_indices = @transform_1, window_bounds = array<i64: 128, 128>}, {transform_indices = @transform_2, window_bounds = array<i64: 128, 32>}, {pipeline_mode = #tpu.pipeline_mode<synchronous>, transform_indices = @transform_3, window_bounds = array<i64: 32, 32>}, {pipeline_mode = #tpu.pipeline_mode<synchronous>, transform_indices = @transform_4, window_bounds = array<i64: 1, 32>}, {pipeline_mode = #tpu.pipeline_mode<synchronous>, transform_indices = @transform_5, window_bounds = array<i64: 32, 32>}, {pipeline_mode = #tpu.pipeline_mode<synchronous>, transform_indices = @transform_6, window_bounds = array<i64: 1, 32>}, {pipeline_mode = #tpu.pipeline_mode<synchronous>, transform_indices = @transform_7, window_bounds = array<i64: 1, 32>}, {pipeline_mode = #tpu.pipeline_mode<synchronous>, transform_indices = @transform_8, window_bounds = array<i64: 32, 128>}, {pipeline_mode = #tpu.pipeline_mode<synchronous>, transform_indices = @transform_9, window_bounds = array<i64: 1, 128>}, {transform_indices = @transform_10, window_bounds = array<i64: 128, 128>}]} {
    %c0_i32 = arith.constant 0 : i32
    %0 = arith.cmpi eq, %arg1, %c0_i32 : i32
    %1 = arith.extui %0 : i1 to i32
    %c0_i32_0 = arith.constant 0 : i32
    %2 = arith.cmpi ne, %1, %c0_i32_0 : i32
    scf.if %2 {
      %c0_10 = arith.constant 0 : index
      %c0_11 = arith.constant 0 : index
      %13 = vector.load %arg2[%c0_10, %c0_11] : memref<128x32xbf16, #tpu.memory_space<vmem>>, vector<128x32xbf16>
      %c0_12 = arith.constant 0 : index
      %c0_13 = arith.constant 0 : index
      %14 = vector.load %arg5[%c0_12, %c0_13] : memref<32x32xbf16, #tpu.memory_space<vmem>>, vector<32x32xbf16>
      %cst_14 = arith.constant dense<0.000000e+00> : vector<128x32xf32>
      %15 = tpu.matmul %13, %14, %cst_14 {dimension_numbers = #tpu.dot_dimension_numbers<[1], [0], [0], [1], [0, 0, 1, 1], [], []>} : vector<128x32xbf16>, vector<32x32xbf16>, vector<128x32xf32> -> vector<128x32xf32>
      %c0_15 = arith.constant 0 : index
      %c0_16 = arith.constant 0 : index
      %16 = vector.load %arg13[%c0_15, %c0_16] : memref<128x32xf32, #tpu.memory_space<vmem>>, vector<128x32xf32>
      tpu.vector_store %arg13[%c0_15, %c0_16], %15 {strides = array<i32>} : memref<128x32xf32, #tpu.memory_space<vmem>>, vector<128x32xf32>,
    } else {
    }
    %c0 = arith.constant 0 : index
    %c0_1 = arith.constant 0 : index
    %3 = vector.load %arg13[%c0, %c0_1] : memref<128x32xf32, #tpu.memory_space<vmem>>, vector<128x32xf32>
    %c0_2 = arith.constant 0 : index
    %c0_3 = arith.constant 0 : index
    %4 = vector.load %arg3[%c0_2, %c0_3] : memref<128x128xf32, #tpu.memory_space<vmem>>, vector<128x128xf32>
    %5 = arith.truncf %4 : vector<128x128xf32> to vector<128x128xbf16>
    %c0_4 = arith.constant 0 : index
    %c0_5 = arith.constant 0 : index
    %6 = vector.load %arg4[%c0_4, %c0_5] : memref<128x32xbf16, #tpu.memory_space<vmem>>, vector<128x32xbf16>
    %cst = arith.constant dense<0.000000e+00> : vector<128x32xf32>
    %7 = tpu.matmul %5, %6, %cst {dimension_numbers = #tpu.dot_dimension_numbers<[1], [0], [0], [1], [0, 0, 1, 1], [], []>} : vector<128x128xbf16>, vector<128x32xbf16>, vector<128x32xf32> -> vector<128x32xf32>
    %8 = arith.addf %3, %7 : vector<128x32xf32>
    %c0_6 = arith.constant 0 : index
    %c0_7 = arith.constant 0 : index
    %9 = vector.load %arg13[%c0_6, %c0_7] : memref<128x32xf32, #tpu.memory_space<vmem>>, vector<128x32xf32>
    tpu.vector_store %arg13[%c0_6, %c0_7], %8 {strides = array<i32>} : memref<128x32xf32, #tpu.memory_space<vmem>>, vector<128x32xf32>,
    %c0_i32_8 = arith.constant 0 : i32
    %10 = arith.cmpi eq, %arg1, %c0_i32_8 : i32
    %11 = arith.extui %10 : i1 to i32
    %c0_i32_9 = arith.constant 0 : i32
    %12 = arith.cmpi ne, %11, %c0_i32_9 : i32
    scf.if %12 {
      %c0_10 = arith.constant 0 : index
      %c0_11 = arith.constant 0 : index
      %13 = vector.load %arg13[%c0_10, %c0_11] : memref<128x32xf32, #tpu.memory_space<vmem>>, vector<128x32xf32>
      %c0_12 = arith.constant 0 : index
      %c0_13 = arith.constant 0 : index
      %14 = vector.load %arg6[%c0_12, %c0_13] : memref<1x32xf32, #tpu.memory_space<vmem>>, vector<1x32xf32>
      %15 = vector.broadcast %14 : vector<1x32xf32> to vector<128x32xf32>
      %16 = arith.addf %13, %15 : vector<128x32xf32>
      %cst_14 = arith.constant 0.000000e+00 : f32
      %17 = vector.broadcast %cst_14 : f32 to vector<128x32xf32>
      %18 = arith.maximumf %16, %17 : vector<128x32xf32>
      %19 = arith.truncf %18 : vector<128x32xf32> to vector<128x32xbf16>
      %c0_15 = arith.constant 0 : index
      %c0_16 = arith.constant 0 : index
      %20 = vector.load %arg7[%c0_15, %c0_16] : memref<32x32xbf16, #tpu.memory_space<vmem>>, vector<32x32xbf16>
      %cst_17 = arith.constant dense<0.000000e+00> : vector<128x32xf32>
      %21 = tpu.matmul %19, %20, %cst_17 {dimension_numbers = #tpu.dot_dimension_numbers<[1], [0], [0], [1], [0, 0, 1, 1], [], []>} : vector<128x32xbf16>, vector<32x32xbf16>, vector<128x32xf32> -> vector<128x32xf32>
      %c0_18 = arith.constant 0 : index
      %c0_19 = arith.constant 0 : index
      %22 = vector.load %arg8[%c0_18, %c0_19] : memref<1x32xf32, #tpu.memory_space<vmem>>, vector<1x32xf32>
      %23 = vector.broadcast %22 : vector<1x32xf32> to vector<128x32xf32>
      %24 = arith.addf %21, %23 : vector<128x32xf32>
      %cst_20 = arith.constant 0.000000e+00 : f32
      %25 = vector.broadcast %cst_20 : f32 to vector<128x32xf32>
      %26 = arith.cmpf oge, %24, %25 : vector<128x32xf32>
      %c0_21 = arith.constant 0 : index
      %c0_22 = arith.constant 0 : index
      %27 = vector.load %arg9[%c0_21, %c0_22] : memref<1x32xf32, #tpu.memory_space<vmem>>, vector<1x32xf32>
      %28 = vector.broadcast %27 : vector<1x32xf32> to vector<128x32xf32>
      %29 = arith.mulf %28, %24 : vector<128x32xf32>
      %30 = arith.select %26, %24, %29 : vector<128x32xi1>, vector<128x32xf32>
      %31 = arith.truncf %30 : vector<128x32xf32> to vector<128x32xbf16>
      %c0_23 = arith.constant 0 : index
      %c0_24 = arith.constant 0 : index
      %32 = vector.load %arg10[%c0_23, %c0_24] : memref<32x128xbf16, #tpu.memory_space<vmem>>, vector<32x128xbf16>
      %cst_25 = arith.constant dense<0.000000e+00> : vector<128x128xf32>
      %33 = tpu.matmul %31, %32, %cst_25 {dimension_numbers = #tpu.dot_dimension_numbers<[1], [0], [0], [1], [0, 0, 1, 1], [], []>} : vector<128x32xbf16>, vector<32x128xbf16>, vector<128x128xf32> -> vector<128x128xf32>
      %c0_26 = arith.constant 0 : index
      %c0_27 = arith.constant 0 : index
      %34 = vector.load %arg11[%c0_26, %c0_27] : memref<1x128xf32, #tpu.memory_space<vmem>>, vector<1x128xf32>
      %35 = vector.broadcast %34 : vector<1x128xf32> to vector<128x128xf32>
      %36 = arith.addf %33, %35 : vector<128x128xf32>
      %c0_28 = arith.constant 0 : index
      %c0_29 = arith.constant 0 : index
      %37 = vector.load %arg12[%c0_28, %c0_29] : memref<128x128xf32, #tpu.memory_space<vmem>>, vector<128x128xf32>
      tpu.vector_store %arg12[%c0_28, %c0_29], %36 {strides = array<i32>} : memref<128x128xf32, #tpu.memory_space<vmem>>, vector<128x128xf32>,
    } else {
    }
    return
  }
  func.func @transform_0(%arg0: i32, %arg1: i32) -> (i32, i32) {
    %c0_i32 = arith.constant 0 : i32
    %c0_i32_0 = arith.constant 0 : i32
    return %arg0, %c0_i32 : i32, i32
  }
  func.func @transform_1(%arg0: i32, %arg1: i32) -> (i32, i32) {
    %c0_i32 = arith.constant 0 : i32
    return %arg0, %arg1 : i32, i32
  }
  func.func @transform_2(%arg0: i32, %arg1: i32) -> (i32, i32) {
    %c0_i32 = arith.constant 0 : i32
    %c0_i32_0 = arith.constant 0 : i32
    return %arg1, %c0_i32 : i32, i32
  }
  func.func @transform_3(%arg0: i32, %arg1: i32) -> (i32, i32) {
    %c0_i32 = arith.constant 0 : i32
    %c0_i32_0 = arith.constant 0 : i32
    %c0_i32_1 = arith.constant 0 : i32
    return %c0_i32, %c0_i32_0 : i32, i32
  }
  func.func @transform_4(%arg0: i32, %arg1: i32) -> (i32, i32) {
    %c0_i32 = arith.constant 0 : i32
    %c0_i32_0 = arith.constant 0 : i32
    %c0_i32_1 = arith.constant 0 : i32
    return %c0_i32, %c0_i32_0 : i32, i32
  }
  func.func @transform_5(%arg0: i32, %arg1: i32) -> (i32, i32) {
    %c0_i32 = arith.constant 0 : i32
    %c0_i32_0 = arith.constant 0 : i32
    %c0_i32_1 = arith.constant 0 : i32
    return %c0_i32, %c0_i32_0 : i32, i32
  }
  func.func @transform_6(%arg0: i32, %arg1: i32) -> (i32, i32) {
    %c0_i32 = arith.constant 0 : i32
    %c0_i32_0 = arith.constant 0 : i32
    %c0_i32_1 = arith.constant 0 : i32
    return %c0_i32, %c0_i32_0 : i32, i32
  }
  func.func @transform_7(%arg0: i32, %arg1: i32) -> (i32, i32) {
    %c0_i32 = arith.constant 0 : i32
    %c0_i32_0 = arith.constant 0 : i32
    %c0_i32_1 = arith.constant 0 : i32
    return %c0_i32, %c0_i32_0 : i32, i32
  }
  func.func @transform_8(%arg0: i32, %arg1: i32) -> (i32, i32) {
    %c0_i32 = arith.constant 0 : i32
    %c0_i32_0 = arith.constant 0 : i32
    %c0_i32_1 = arith.constant 0 : i32
    return %c0_i32, %c0_i32_0 : i32, i32
  }
  func.func @transform_9(%arg0: i32, %arg1: i32) -> (i32, i32) {
    %c0_i32 = arith.constant 0 : i32
    %c0_i32_0 = arith.constant 0 : i32
    %c0_i32_1 = arith.constant 0 : i32
    return %c0_i32, %c0_i32_0 : i32, i32
  }
  func.func @transform_10(%arg0: i32, %arg1: i32) -> (i32, i32) {
    %c0_i32 = arith.constant 0 : i32
    %c0_i32_0 = arith.constant 0 : i32
    return %arg0, %c0_i32 : i32, i32
  }
}

</mosaic_0001>

<llo_original>
// kernel: gcn_v_forward.1
$region0: #{gcn_v_forward.1}
  #allocation0 [shape = 'u32[]', space=smem, size = 0x4, offset = 0x4, fixed_abs, tag = 'smem constant byte address 0x4 - core index']
  #allocation1 [shape = 'u32[72,128]{1,0:T(1,128)}', space=vmem, size = 0x9000, scoped, tag = 'internal scratch']
  #allocation2 [shape = 'f32[128,32]{1,0:T(8,128)}', space=vmem, size = 0x10000, scoped, tag = 'scratch operand']
  %s0 = inlined_call_operand.vmem [shape: bf16[128,32], index: 0, kind: input, shape index: {}]
  %s1 = inlined_call_operand.vmem [shape: f32[128,128], index: 1, kind: input, shape index: {}]
  %s2 = inlined_call_operand.vmem [shape: bf16[128,32], index: 2, kind: input, shape index: {}]
  %s3 = inlined_call_operand.vmem [shape: bf16[32,32], index: 3, kind: input, shape index: {}]
  %s4 = inlined_call_operand.vmem [shape: f32[1,32], index: 4, kind: input, shape index: {}]
  %s5 = inlined_call_operand.vmem [shape: bf16[32,32], index: 5, kind: input, shape index: {}]
  %s6 = inlined_call_operand.vmem [shape: f32[1,32], index: 6, kind: input, shape index: {}]
  %s7 = inlined_call_operand.vmem [shape: f32[1,32], index: 7, kind: input, shape index: {}]
  %s8 = inlined_call_operand.vmem [shape: bf16[32,128], index: 8, kind: input, shape index: {}]
  %s9 = inlined_call_operand.vmem [shape: f32[1,128], index: 9, kind: input, shape index: {}]
  %s10 = inlined_call_operand.vmem [shape: f32[128,128], index: 10, kind: output, shape index: {}]
  %s11 = sld [smem:[#allocation0]]
  $region58: #{gcn_v_forward.1} parent=0
    _
  %s13 = ssub.s32 1, %s11
  %s14 = scalar_select 0, %s13, %s11
  // Predicated region
  $region2: #{gcn_v_forward.1} parent=0 // pred_check
    _
  $region3: #{gcn_v_forward.1} parent=0 // pred_check_branch
    %16 = sbr.rel (0) target = $region5
  $region4: #{gcn_v_forward.1} parent=0 // pred_region
    _
  $region5: #{gcn_v_forward.1} parent=0 // pred_fallthru
    _
  // Predicated region
  $region6: #{gcn_v_forward.1} parent=0 // pred_check
    _
  $region7: #{gcn_v_forward.1} parent=0 // pred_check_branch
    %18 = sbr.rel (0) target = $region9
  $region8: #{gcn_v_forward.1} parent=0 // pred_region
    _
  $region9: #{gcn_v_forward.1} parent=0 // pred_fallthru
    _
  // Predicated region
  $region10: #{gcn_v_forward.1} parent=0 // pred_check
    _
  $region11: #{gcn_v_forward.1} parent=0 // pred_check_branch
    %20 = sbr.rel (0) target = $region13
  $region12: #{gcn_v_forward.1} parent=0 // pred_region
    _
  $region13: #{gcn_v_forward.1} parent=0 // pred_fallthru
    _
  // Predicated region
  $region14: #{gcn_v_forward.1} parent=0 // pred_check
    _
  $region15: #{gcn_v_forward.1} parent=0 // pred_check_branch
    %22 = sbr.rel (0) target = $region17
  $region16: #{gcn_v_forward.1} parent=0 // pred_region
    _
  $region17: #{gcn_v_forward.1} parent=0 // pred_fallthru
    _
  // Predicated region
  $region18: #{gcn_v_forward.1} parent=0 // pred_check
    _
  $region19: #{gcn_v_forward.1} parent=0 // pred_check_branch
    %24 = sbr.rel (0) target = $region21
  $region20: #{gcn_v_forward.1} parent=0 // pred_region
    _
  $region21: #{gcn_v_forward.1} parent=0 // pred_fallthru
    _
  // Predicated region
  $region22: #{gcn_v_forward.1} parent=0 // pred_check
    _
  $region23: #{gcn_v_forward.1} parent=0 // pred_check_branch
    %26 = sbr.rel (0) target = $region25
  $region24: #{gcn_v_forward.1} parent=0 // pred_region
    _
  $region25: #{gcn_v_forward.1} parent=0 // pred_fallthru
    _
  // Predicated region
  $region26: #{gcn_v_forward.1} parent=0 // pred_check
    _
  $region27: #{gcn_v_forward.1} parent=0 // pred_check_branch
    %28 = sbr.rel (0) target = $region29
  $region28: #{gcn_v_forward.1} parent=0 // pred_region
    _
  $region29: #{gcn_v_forward.1} parent=0 // pred_fallthru
    _
  // Predicated region
  $region30: #{gcn_v_forward.1} parent=0 // pred_check
    _
  $region31: #{gcn_v_forward.1} parent=0 // pred_check_branch
    %30 = sbr.rel (0) target = $region33
  $region32: #{gcn_v_forward.1} parent=0 // pred_region
    _
  $region33: #{gcn_v_forward.1} parent=0 // pred_fallthru
    _
  // Predicated region
  $region34: #{gcn_v_forward.1} parent=0 // pred_check
    _
  $region35: #{gcn_v_forward.1} parent=0 // pred_check_branch
    %32 = sbr.rel (0) target = $region37
  $region36: #{gcn_v_forward.1} parent=0 // pred_region
    _
  $region37: #{gcn_v_forward.1} parent=0 // pred_fallthru
    _
  // Predicated region
  $region38: #{gcn_v_forward.1} parent=0 // pred_check
    _
  $region39: #{gcn_v_forward.1} parent=0 // pred_check_branch
    %34 = sbr.rel (0) target = $region41
  $region40: #{gcn_v_forward.1} parent=0 // pred_region
    _
  $region41: #{gcn_v_forward.1} parent=0 // pred_fallthru
    _
  %p36 = scmp.eq.s32.totalorder 0, 0
  // Predicated region
  $region42: #{gcn_v_forward.1} parent=0 // pred_check
    %p37 = pneg %p36
  $region43: #{gcn_v_forward.1} parent=0 // pred_check_branch
    %39 = sbr.rel (%p37) target = $region45
  $region44: #{gcn_v_forward.1} parent=0 // pred_region
    %v40 = vld [vmem:[%s0] sm:$0xf]
    %v41 = vld [vmem:[%s0 + $0x4] sm:$0xf]
    %v42 = vld [vmem:[%s0 + $0x8] sm:$0xf]
    %v43 = vld [vmem:[%s0 + $0xc] sm:$0xf]
    %v44 = vld [vmem:[%s0 + $0x10] sm:$0xf]
    %v45 = vld [vmem:[%s0 + $0x14] sm:$0xf]
    %v46 = vld [vmem:[%s0 + $0x18] sm:$0xf]
    %v47 = vld [vmem:[%s0 + $0x1c] sm:$0xf]
    %v48 = vld [vmem:[%s0 + $0x20] sm:$0xf]
    %v49 = vld [vmem:[%s0 + $0x24] sm:$0xf]
    %v50 = vld [vmem:[%s0 + $0x28] sm:$0xf]
    %v51 = vld [vmem:[%s0 + $0x2c] sm:$0xf]
    %v52 = vld [vmem:[%s0 + $0x30] sm:$0xf]
    %v53 = vld [vmem:[%s0 + $0x34] sm:$0xf]
    %v54 = vld [vmem:[%s0 + $0x38] sm:$0xf]
    %v55 = vld [vmem:[%s0 + $0x3c] sm:$0xf]
    %v56 = vld [vmem:[%s3] sm:$0xf]
    %v57 = vld [vmem:[%s3 + $0x4] sm:$0xf]
    %v58 = vld [vmem:[%s3 + $0x8] sm:$0xf]
    %v59 = vld [vmem:[%s3 + $0xc] sm:$0xf]
    %v76 = vunpack.c.l.b16 %v40
    %v77 = vunpack.c.l.b16 %v41
    %v78 = vunpack.c.l.b16 %v42
    %v79 = vunpack.c.l.b16 %v43
    %v80 = vunpack.c.l.b16 %v44
    %v81 = vunpack.c.l.b16 %v45
    %v82 = vunpack.c.l.b16 %v46
    %v83 = vunpack.c.l.b16 %v47
    %v84 = vunpack.c.l.b16 %v48
    %v85 = vunpack.c.l.b16 %v49
    %v86 = vunpack.c.l.b16 %v50
    %v87 = vunpack.c.l.b16 %v51
    %v88 = vunpack.c.l.b16 %v52
    %v89 = vunpack.c.l.b16 %v53
    %v90 = vunpack.c.l.b16 %v54
    %v91 = vunpack.c.l.b16 %v55
    %v92 = vpack.c.b16 %v77, %v76
    %v93 = vpack.c.b16 %v79, %v78
    %v94 = vpack.c.b16 %v81, %v80
    %v95 = vpack.c.b16 %v83, %v82
    %v96 = vpack.c.b16 %v85, %v84
    %v97 = vpack.c.b16 %v87, %v86
    %v98 = vpack.c.b16 %v89, %v88
    %v99 = vpack.c.b16 %v91, %v90
    %v104 = vunpack.c.l.b16 %v56
    %v105 = vunpack.c.l.b16 %v57
    %v106 = vunpack.c.l.b16 %v58
    %v107 = vunpack.c.l.b16 %v59
    %v108 = vpack.c.b16 %v105, %v104
    %v109 = vpack.c.b16 %v107, %v106
    %vm112 = vcmask 261120
    %v114 = vsel %vm112, %v92, 0
    %v117 = vsel %vm112, %v93, 0
    %v120 = vsel %vm112, %v94, 0
    %v123 = vsel %vm112, %v95, 0
    %v126 = vsel %vm112, %v96, 0
    %v129 = vsel %vm112, %v97, 0
    %v132 = vsel %vm112, %v98, 0
    %v135 = vsel %vm112, %v99, 0
    %137 = vmatpush.bf16.msra.mxu0 0
    %138 = vmatpush.bf16.msra.mxu0 0
    %139 = vmatpush.bf16.msra.mxu0 0
    %140 = vmatpush.bf16.msra.mxu0 0
    %141 = vmatpush.bf16.msra.mxu0 0
    %142 = vmatpush.bf16.msra.mxu0 0
    %143 = vmatpush.bf16.msra.mxu0 %v109
    %144 = vmatpush.bf16.msra.mxu0 %v108
    %145 = vmatmul.bf16.gmra.mxu0 %v114
    %v146 = vpop.f32.mrf.mxu0
    %v147 = vadd.f32 0.0, %v146
    %v148 = vpop.f32.mrf.mxu0
    %v149 = vadd.f32 0.0, %v148
    %150 = vmatmul.bf16.gmra.mxu0 %v117
    %v151 = vpop.f32.mrf.mxu0
    %v152 = vadd.f32 0.0, %v151
    %v153 = vpop.f32.mrf.mxu0
    %v154 = vadd.f32 0.0, %v153
    %155 = vmatmul.bf16.gmra.mxu0 %v120
    %v156 = vpop.f32.mrf.mxu0
    %v157 = vadd.f32 0.0, %v156
    %v158 = vpop.f32.mrf.mxu0
    %v159 = vadd.f32 0.0, %v158
    %160 = vmatmul.bf16.gmra.mxu0 %v123
    %v161 = vpop.f32.mrf.mxu0
    %v162 = vadd.f32 0.0, %v161
    %v163 = vpop.f32.mrf.mxu0
    %v164 = vadd.f32 0.0, %v163
    %165 = vmatmul.bf16.gmra.mxu0 %v126
    %v166 = vpop.f32.mrf.mxu0
    %v167 = vadd.f32 0.0, %v166
    %v168 = vpop.f32.mrf.mxu0
    %v169 = vadd.f32 0.0, %v168
    %170 = vmatmul.bf16.gmra.mxu0 %v129
    %v171 = vpop.f32.mrf.mxu0
    %v172 = vadd.f32 0.0, %v171
    %v173 = vpop.f32.mrf.mxu0
    %v174 = vadd.f32 0.0, %v173
    %175 = vmatmul.bf16.gmra.mxu0 %v132
    %v176 = vpop.f32.mrf.mxu0
    %v177 = vadd.f32 0.0, %v176
    %v178 = vpop.f32.mrf.mxu0
    %v179 = vadd.f32 0.0, %v178
    %180 = vmatmul.bf16.gmra.mxu0 %v135
    %v181 = vpop.f32.mrf.mxu0
    %v182 = vadd.f32 0.0, %v181
    %v183 = vpop.f32.mrf.mxu0
    %v184 = vadd.f32 0.0, %v183
    %185 = vdwg.mxu0
    %186 = vst.msk [vmem:[#allocation2] sm:$0xff] %vm112, %v147
    %187 = vst.msk [vmem:[#allocation2 + $0x8] sm:$0xff] %vm112, %v149
    %188 = vst.msk [vmem:[#allocation2 + $0x10] sm:$0xff] %vm112, %v152
    %189 = vst.msk [vmem:[#allocation2 + $0x18] sm:$0xff] %vm112, %v154
    %190 = vst.msk [vmem:[#allocation2 + $0x20] sm:$0xff] %vm112, %v157
    %191 = vst.msk [vmem:[#allocation2 + $0x28] sm:$0xff] %vm112, %v159
    %192 = vst.msk [vmem:[#allocation2 + $0x30] sm:$0xff] %vm112, %v162
    %193 = vst.msk [vmem:[#allocation2 + $0x38] sm:$0xff] %vm112, %v164
    %194 = vst.msk [vmem:[#allocation2 + $0x40] sm:$0xff] %vm112, %v167
    %195 = vst.msk [vmem:[#allocation2 + $0x48] sm:$0xff] %vm112, %v169
    %196 = vst.msk [vmem:[#allocation2 + $0x50] sm:$0xff] %vm112, %v172
    %197 = vst.msk [vmem:[#allocation2 + $0x58] sm:$0xff] %vm112, %v174
    %198 = vst.msk [vmem:[#allocation2 + $0x60] sm:$0xff] %vm112, %v177
    %199 = vst.msk [vmem:[#allocation2 + $0x68] sm:$0xff] %vm112, %v179
    %200 = vst.msk [vmem:[#allocation2 + $0x70] sm:$0xff] %vm112, %v182
    %201 = vst.msk [vmem:[#allocation2 + $0x78] sm:$0xff] %vm112, %v184
  $region45: #{gcn_v_forward.1} parent=0 // pred_fallthru
    _
  %v202 = vld [vmem:[#allocation2] sm:$0xff]
  %v203 = vld [vmem:[#allocation2 + $0x8] sm:$0xff]
  %v204 = vld [vmem:[#allocation2 + $0x10] sm:$0xff]
  %v205 = vld [vmem:[#allocation2 + $0x18] sm:$0xff]
  %v206 = vld [vmem:[#allocation2 + $0x20] sm:$0xff]
  %v207 = vld [vmem:[#allocation2 + $0x28] sm:$0xff]
  %v208 = vld [vmem:[#allocation2 + $0x30] sm:$0xff]
  %v209 = vld [vmem:[#allocation2 + $0x38] sm:$0xff]
  %v210 = vld [vmem:[#allocation2 + $0x40] sm:$0xff]
  %v211 = vld [vmem:[#allocation2 + $0x48] sm:$0xff]
  %v212 = vld [vmem:[#allocation2 + $0x50] sm:$0xff]
  %v213 = vld [vmem:[#allocation2 + $0x58] sm:$0xff]
  %v214 = vld [vmem:[#allocation2 + $0x60] sm:$0xff]
  %v215 = vld [vmem:[#allocation2 + $0x68] sm:$0xff]
  %v216 = vld [vmem:[#allocation2 + $0x70] sm:$0xff]
  %v217 = vld [vmem:[#allocation2 + $0x78] sm:$0xff]
  %v218 = vld [vmem:[%s1] sm:$0xff]
  %v219 = vld [vmem:[%s1 + $0x8] sm:$0xff]
  %v220 = vld [vmem:[%s1 + $0x10] sm:$0xff]
  %v221 = vld [vmem:[%s1 + $0x18] sm:$0xff]
  %v222 = vld [vmem:[%s1 + $0x20] sm:$0xff]
  %v223 = vld [vmem:[%s1 + $0x28] sm:$0xff]
  %v224 = vld [vmem:[%s1 + $0x30] sm:$0xff]
  %v225 = vld [vmem:[%s1 + $0x38] sm:$0xff]
  %v226 = vld [vmem:[%s1 + $0x40] sm:$0xff]
  %v227 = vld [vmem:[%s1 + $0x48] sm:$0xff]
  %v228 = vld [vmem:[%s1 + $0x50] sm:$0xff]
  %v229 = vld [vmem:[%s1 + $0x58] sm:$0xff]
  %v230 = vld [vmem:[%s1 + $0x60] sm:$0xff]
  %v231 = vld [vmem:[%s1 + $0x68] sm:$0xff]
  %v232 = vld [vmem:[%s1 + $0x70] sm:$0xff]
  %v233 = vld [vmem:[%s1 + $0x78] sm:$0xff]
  %v234 = vpack.c.bf16 %v219, %v218
  %v235 = vpack.c.bf16 %v221, %v220
  %v236 = vpack.c.bf16 %v223, %v222
  %v237 = vpack.c.bf16 %v225, %v224
  %v238 = vpack.c.bf16 %v227, %v226
  %v239 = vpack.c.bf16 %v229, %v228
  %v240 = vpack.c.bf16 %v231, %v230
  %v241 = vpack.c.bf16 %v233, %v232
  %v242 = vld [vmem:[%s2] sm:$0xf]
  %v243 = vld [vmem:[%s2 + $0x4] sm:$0xf]
  %v244 = vld [vmem:[%s2 + $0x8] sm:$0xf]
  %v245 = vld [vmem:[%s2 + $0xc] sm:$0xf]
  %v246 = vld [vmem:[%s2 + $0x10] sm:$0xf]
  %v247 = vld [vmem:[%s2 + $0x14] sm:$0xf]
  %v248 = vld [vmem:[%s2 + $0x18] sm:$0xf]
  %v249 = vld [vmem:[%s2 + $0x1c] sm:$0xf]
  %v250 = vld [vmem:[%s2 + $0x20] sm:$0xf]
  %v251 = vld [vmem:[%s2 + $0x24] sm:$0xf]
  %v252 = vld [vmem:[%s2 + $0x28] sm:$0xf]
  %v253 = vld [vmem:[%s2 + $0x2c] sm:$0xf]
  %v254 = vld [vmem:[%s2 + $0x30] sm:$0xf]
  %v255 = vld [vmem:[%s2 + $0x34] sm:$0xf]
  %v256 = vld [vmem:[%s2 + $0x38] sm:$0xf]
  %v257 = vld [vmem:[%s2 + $0x3c] sm:$0xf]
  %v274 = vunpack.c.l.b16 %v242
  %v275 = vunpack.c.l.b16 %v243
  %v276 = vunpack.c.l.b16 %v244
  %v277 = vunpack.c.l.b16 %v245
  %v278 = vunpack.c.l.b16 %v246
  %v279 = vunpack.c.l.b16 %v247
  %v280 = vunpack.c.l.b16 %v248
  %v281 = vunpack.c.l.b16 %v249
  %v282 = vunpack.c.l.b16 %v250
  %v283 = vunpack.c.l.b16 %v251
  %v284 = vunpack.c.l.b16 %v252
  %v285 = vunpack.c.l.b16 %v253
  %v286 = vunpack.c.l.b16 %v254
  %v287 = vunpack.c.l.b16 %v255
  %v288 = vunpack.c.l.b16 %v256
  %v289 = vunpack.c.l.b16 %v257
  %v290 = vpack.c.b16 %v275, %v274
  %v291 = vpack.c.b16 %v277, %v276
  %v292 = vpack.c.b16 %v279, %v278
  %v293 = vpack.c.b16 %v281, %v280
  %v294 = vpack.c.b16 %v283, %v282
  %v295 = vpack.c.b16 %v285, %v284
  %v296 = vpack.c.b16 %v287, %v286
  %v297 = vpack.c.b16 %v289, %v288
  %306 = vmatpush.bf16.msra.mxu0 %v297
  %307 = vmatpush.bf16.msra.mxu0 %v296
  %308 = vmatpush.bf16.msra.mxu0 %v295
  %309 = vmatpush.bf16.msra.mxu0 %v294
  %310 = vmatpush.bf16.msra.mxu0 %v293
  %311 = vmatpush.bf16.msra.mxu0 %v292
  %312 = vmatpush.bf16.msra.mxu0 %v291
  %313 = vmatpush.bf16.msra.mxu0 %v290
  %314 = vmatmul.bf16.gmra.mxu0 %v234
  %v315 = vpop.f32.mrf.mxu0
  %v316 = vadd.f32 0.0, %v315
  %v317 = vpop.f32.mrf.mxu0
  %v318 = vadd.f32 0.0, %v317
  %319 = vmatmul.bf16.gmra.mxu0 %v235
  %v320 = vpop.f32.mrf.mxu0
  %v321 = vadd.f32 0.0, %v320
  %v322 = vpop.f32.mrf.mxu0
  %v323 = vadd.f32 0.0, %v322
  %324 = vmatmul.bf16.gmra.mxu0 %v236
  %v325 = vpop.f32.mrf.mxu0
  %v326 = vadd.f32 0.0, %v325
  %v327 = vpop.f32.mrf.mxu0
  %v328 = vadd.f32 0.0, %v327
  %329 = vmatmul.bf16.gmra.mxu0 %v237
  %v330 = vpop.f32.mrf.mxu0
  %v331 = vadd.f32 0.0, %v330
  %v332 = vpop.f32.mrf.mxu0
  %v333 = vadd.f32 0.0, %v332
  %334 = vmatmul.bf16.gmra.mxu0 %v238
  %v335 = vpop.f32.mrf.mxu0
  %v336 = vadd.f32 0.0, %v335
  %v337 = vpop.f32.mrf.mxu0
  %v338 = vadd.f32 0.0, %v337
  %339 = vmatmul.bf16.gmra.mxu0 %v239
  %v340 = vpop.f32.mrf.mxu0
  %v341 = vadd.f32 0.0, %v340
  %v342 = vpop.f32.mrf.mxu0
  %v343 = vadd.f32 0.0, %v342
  %344 = vmatmul.bf16.gmra.mxu0 %v240
  %v345 = vpop.f32.mrf.mxu0
  %v346 = vadd.f32 0.0, %v345
  %v347 = vpop.f32.mrf.mxu0
  %v348 = vadd.f32 0.0, %v347
  %349 = vmatmul.bf16.gmra.mxu0 %v241
  %v350 = vpop.f32.mrf.mxu0
  %v351 = vadd.f32 0.0, %v350
  %v352 = vpop.f32.mrf.mxu0
  %v353 = vadd.f32 0.0, %v352
  %354 = vdwg.mxu0
  %v355 = vadd.f32 %v202, %v316
  %v356 = vadd.f32 %v203, %v318
  %v357 = vadd.f32 %v204, %v321
  %v358 = vadd.f32 %v205, %v323
  %v359 = vadd.f32 %v206, %v326
  %v360 = vadd.f32 %v207, %v328
  %v361 = vadd.f32 %v208, %v331
  %v362 = vadd.f32 %v209, %v333
  %v363 = vadd.f32 %v210, %v336
  %v364 = vadd.f32 %v211, %v338
  %v365 = vadd.f32 %v212, %v341
  %v366 = vadd.f32 %v213, %v343
  %v367 = vadd.f32 %v214, %v346
  %v368 = vadd.f32 %v215, %v348
  %v369 = vadd.f32 %v216, %v351
  %v370 = vadd.f32 %v217, %v353
  %vm371 = vcmask 261120
  %372 = vst.msk [vmem:[#allocation2] sm:$0xff] %vm371, %v355
  %373 = vst.msk [vmem:[#allocation2 + $0x8] sm:$0xff] %vm371, %v356
  %374 = vst.msk [vmem:[#allocation2 + $0x10] sm:$0xff] %vm371, %v357
  %375 = vst.msk [vmem:[#allocation2 + $0x18] sm:$0xff] %vm371, %v358
  %376 = vst.msk [vmem:[#allocation2 + $0x20] sm:$0xff] %vm371, %v359
  %377 = vst.msk [vmem:[#allocation2 + $0x28] sm:$0xff] %vm371, %v360
  %378 = vst.msk [vmem:[#allocation2 + $0x30] sm:$0xff] %vm371, %v361
  %379 = vst.msk [vmem:[#allocation2 + $0x38] sm:$0xff] %vm371, %v362
  %380 = vst.msk [vmem:[#allocation2 + $0x40] sm:$0xff] %vm371, %v363
  %381 = vst.msk [vmem:[#allocation2 + $0x48] sm:$0xff] %vm371, %v364
  %382 = vst.msk [vmem:[#allocation2 + $0x50] sm:$0xff] %vm371, %v365
  %383 = vst.msk [vmem:[#allocation2 + $0x58] sm:$0xff] %vm371, %v366
  %384 = vst.msk [vmem:[#allocation2 + $0x60] sm:$0xff] %vm371, %v367
  %385 = vst.msk [vmem:[#allocation2 + $0x68] sm:$0xff] %vm371, %v368
  %386 = vst.msk [vmem:[#allocation2 + $0x70] sm:$0xff] %vm371, %v369
  %387 = vst.msk [vmem:[#allocation2 + $0x78] sm:$0xff] %vm371, %v370
  // Predicated region
  $region46: #{gcn_v_forward.1} parent=0 // pred_check
    %p388 = pneg %p36
  $region47: #{gcn_v_forward.1} parent=0 // pred_check_branch
    %390 = sbr.rel (%p388) target = $region49
  $region48: #{gcn_v_forward.1} parent=0 // pred_region
    %v391 = vld [vmem:[#allocation2] sm:$0xff]
    %v392 = vld [vmem:[#allocation2 + $0x8] sm:$0xff]
    %v393 = vld [vmem:[#allocation2 + $0x10] sm:$0xff]
    %v394 = vld [vmem:[#allocation2 + $0x18] sm:$0xff]
    %v395 = vld [vmem:[#allocation2 + $0x20] sm:$0xff]
    %v396 = vld [vmem:[#allocation2 + $0x28] sm:$0xff]
    %v397 = vld [vmem:[#allocation2 + $0x30] sm:$0xff]
    %v398 = vld [vmem:[#allocation2 + $0x38] sm:$0xff]
    %v399 = vld [vmem:[#allocation2 + $0x40] sm:$0xff]
    %v400 = vld [vmem:[#allocation2 + $0x48] sm:$0xff]
    %v401 = vld [vmem:[#allocation2 + $0x50] sm:$0xff]
    %v402 = vld [vmem:[#allocation2 + $0x58] sm:$0xff]
    %v403 = vld [vmem:[#allocation2 + $0x60] sm:$0xff]
    %v404 = vld [vmem:[#allocation2 + $0x68] sm:$0xff]
    %v405 = vld [vmem:[#allocation2 + $0x70] sm:$0xff]
    %v406 = vld [vmem:[#allocation2 + $0x78] sm:$0xff]
    %v407 = vld [vmem:[%s4] sm:$0x1]
    %v409 = vperm.slane %v407, 0
    %v411 = vadd.f32 %v391, %v409
    %v412 = vadd.f32 %v392, %v409
    %v413 = vadd.f32 %v393, %v409
    %v414 = vadd.f32 %v394, %v409
    %v415 = vadd.f32 %v395, %v409
    %v416 = vadd.f32 %v396, %v409
    %v417 = vadd.f32 %v397, %v409
    %v418 = vadd.f32 %v398, %v409
    %v419 = vadd.f32 %v399, %v409
    %v420 = vadd.f32 %v400, %v409
    %v421 = vadd.f32 %v401, %v409
    %v422 = vadd.f32 %v402, %v409
    %v423 = vadd.f32 %v403, %v409
    %v424 = vadd.f32 %v404, %v409
    %v425 = vadd.f32 %v405, %v409
    %v426 = vadd.f32 %v406, %v409
    %v427 = vmax.f32 %v411, 0.0
    %v428 = vmax.f32 %v412, 0.0
    %v429 = vmax.f32 %v413, 0.0
    %v430 = vmax.f32 %v414, 0.0
    %v431 = vmax.f32 %v415, 0.0
    %v432 = vmax.f32 %v416, 0.0
    %v433 = vmax.f32 %v417, 0.0
    %v434 = vmax.f32 %v418, 0.0
    %v435 = vmax.f32 %v419, 0.0
    %v436 = vmax.f32 %v420, 0.0
    %v437 = vmax.f32 %v421, 0.0
    %v438 = vmax.f32 %v422, 0.0
    %v439 = vmax.f32 %v423, 0.0
    %v440 = vmax.f32 %v424, 0.0
    %v441 = vmax.f32 %v425, 0.0
    %v442 = vmax.f32 %v426, 0.0
    %v443 = vpack.c.bf16 %v428, %v427
    %v444 = vpack.c.bf16 %v430, %v429
    %v445 = vpack.c.bf16 %v432, %v431
    %v446 = vpack.c.bf16 %v434, %v433
    %v447 = vpack.c.bf16 %v436, %v435
    %v448 = vpack.c.bf16 %v438, %v437
    %v449 = vpack.c.bf16 %v440, %v439
    %v450 = vpack.c.bf16 %v442, %v441
    %v451 = vld [vmem:[%s5] sm:$0xf]
    %v452 = vld [vmem:[%s5 + $0x4] sm:$0xf]
    %v453 = vld [vmem:[%s5 + $0x8] sm:$0xf]
    %v454 = vld [vmem:[%s5 + $0xc] sm:$0xf]
    %v455 = vld [vmem:[%s6] sm:$0x1]
    %v457 = vperm.slane %v455, 0
    %v463 = vunpack.c.l.b16 %v451
    %v464 = vunpack.c.l.b16 %v452
    %v465 = vunpack.c.l.b16 %v453
    %v466 = vunpack.c.l.b16 %v454
    %v467 = vpack.c.b16 %v464, %v463
    %v468 = vpack.c.b16 %v466, %v465
    %v472 = vsel %vm371, %v443, 0
    %v475 = vsel %vm371, %v444, 0
    %v478 = vsel %vm371, %v445, 0
    %v481 = vsel %vm371, %v446, 0
    %v484 = vsel %vm371, %v447, 0
    %v487 = vsel %vm371, %v448, 0
    %v490 = vsel %vm371, %v449, 0
    %v493 = vsel %vm371, %v450, 0
    %495 = vmatpush.bf16.msra.mxu0 0
    %496 = vmatpush.bf16.msra.mxu0 0
    %497 = vmatpush.bf16.msra.mxu0 0
    %498 = vmatpush.bf16.msra.mxu0 0
    %499 = vmatpush.bf16.msra.mxu0 0
    %500 = vmatpush.bf16.msra.mxu0 0
    %501 = vmatpush.bf16.msra.mxu0 %v468
    %502 = vmatpush.bf16.msra.mxu0 %v467
    %503 = vmatmul.bf16.gmra.mxu0 %v472
    %v504 = vpop.f32.mrf.mxu0
    %v505 = vadd.f32 %v457, %v504
    %v506 = vpop.f32.mrf.mxu0
    %v507 = vadd.f32 %v457, %v506
    %508 = vmatmul.bf16.gmra.mxu0 %v475
    %v509 = vpop.f32.mrf.mxu0
    %v510 = vadd.f32 %v457, %v509
    %v511 = vpop.f32.mrf.mxu0
    %v512 = vadd.f32 %v457, %v511
    %513 = vmatmul.bf16.gmra.mxu0 %v478
    %v514 = vpop.f32.mrf.mxu0
    %v515 = vadd.f32 %v457, %v514
    %v516 = vpop.f32.mrf.mxu0
    %v517 = vadd.f32 %v457, %v516
    %518 = vmatmul.bf16.gmra.mxu0 %v481
    %v519 = vpop.f32.mrf.mxu0
    %v520 = vadd.f32 %v457, %v519
    %v521 = vpop.f32.mrf.mxu0
    %v522 = vadd.f32 %v457, %v521
    %523 = vmatmul.bf16.gmra.mxu0 %v484
    %v524 = vpop.f32.mrf.mxu0
    %v525 = vadd.f32 %v457, %v524
    %v526 = vpop.f32.mrf.mxu0
    %v527 = vadd.f32 %v457, %v526
    %528 = vmatmul.bf16.gmra.mxu0 %v487
    %v529 = vpop.f32.mrf.mxu0
    %v530 = vadd.f32 %v457, %v529
    %v531 = vpop.f32.mrf.mxu0
    %v532 = vadd.f32 %v457, %v531
    %533 = vmatmul.bf16.gmra.mxu0 %v490
    %v534 = vpop.f32.mrf.mxu0
    %v535 = vadd.f32 %v457, %v534
    %v536 = vpop.f32.mrf.mxu0
    %v537 = vadd.f32 %v457, %v536
    %538 = vmatmul.bf16.gmra.mxu0 %v493
    %v539 = vpop.f32.mrf.mxu0
    %v540 = vadd.f32 %v457, %v539
    %v541 = vpop.f32.mrf.mxu0
    %v542 = vadd.f32 %v457, %v541
    %543 = vdwg.mxu0
    %vm544 = vcmp.ge.f32.partialorder %v505, 0.0
    %vm545 = vcmp.ge.f32.partialorder %v507, 0.0
    %vm546 = vcmp.ge.f32.partialorder %v510, 0.0
    %vm547 = vcmp.ge.f32.partialorder %v512, 0.0
    %vm548 = vcmp.ge.f32.partialorder %v515, 0.0
    %vm549 = vcmp.ge.f32.partialorder %v517, 0.0
    %vm550 = vcmp.ge.f32.partialorder %v520, 0.0
    %vm551 = vcmp.ge.f32.partialorder %v522, 0.0
    %vm552 = vcmp.ge.f32.partialorder %v525, 0.0
    %vm553 = vcmp.ge.f32.partialorder %v527, 0.0
    %vm554 = vcmp.ge.f32.partialorder %v530, 0.0
    %vm555 = vcmp.ge.f32.partialorder %v532, 0.0
    %vm556 = vcmp.ge.f32.partialorder %v535, 0.0
    %vm557 = vcmp.ge.f32.partialorder %v537, 0.0
    %vm558 = vcmp.ge.f32.partialorder %v540, 0.0
    %vm559 = vcmp.ge.f32.partialorder %v542, 0.0
    %v560 = vld [vmem:[%s7] sm:$0x1]
    %v562 = vperm.slane %v560, 0
    %v564 = vmul.f32 %v562, %v505
    %v565 = vmul.f32 %v562, %v507
    %v566 = vmul.f32 %v562, %v510
    %v567 = vmul.f32 %v562, %v512
    %v568 = vmul.f32 %v562, %v515
    %v569 = vmul.f32 %v562, %v517
    %v570 = vmul.f32 %v562, %v520
    %v571 = vmul.f32 %v562, %v522
    %v572 = vmul.f32 %v562, %v525
    %v573 = vmul.f32 %v562, %v527
    %v574 = vmul.f32 %v562, %v530
    %v575 = vmul.f32 %v562, %v532
    %v576 = vmul.f32 %v562, %v535
    %v577 = vmul.f32 %v562, %v537
    %v578 = vmul.f32 %v562, %v540
    %v579 = vmul.f32 %v562, %v542
    %v580 = vsel %vm544, %v505, %v564
    %v581 = vsel %vm545, %v507, %v565
    %v582 = vsel %vm546, %v510, %v566
    %v583 = vsel %vm547, %v512, %v567
    %v584 = vsel %vm548, %v515, %v568
    %v585 = vsel %vm549, %v517, %v569
    %v586 = vsel %vm550, %v520, %v570
    %v587 = vsel %vm551, %v522, %v571
    %v588 = vsel %vm552, %v525, %v572
    %v589 = vsel %vm553, %v527, %v573
    %v590 = vsel %vm554, %v530, %v574
    %v591 = vsel %vm555, %v532, %v575
    %v592 = vsel %vm556, %v535, %v576
    %v593 = vsel %vm557, %v537, %v577
    %v594 = vsel %vm558, %v540, %v578
    %v595 = vsel %vm559, %v542, %v579
    %v596 = vpack.c.bf16 %v581, %v580
    %v597 = vpack.c.bf16 %v583, %v582
    %v598 = vpack.c.bf16 %v585, %v584
    %v599 = vpack.c.bf16 %v587, %v586
    %v600 = vpack.c.bf16 %v589, %v588
    %v601 = vpack.c.bf16 %v591, %v590
    %v602 = vpack.c.bf16 %v593, %v592
    %v603 = vpack.c.bf16 %v595, %v594
    %v604 = vld [vmem:[%s8] sm:$0xf]
    %v605 = vld [vmem:[%s8 + $0x4] sm:$0xf]
    %v606 = vld [vmem:[%s8 + $0x8] sm:$0xf]
    %v607 = vld [vmem:[%s8 + $0xc] sm:$0xf]
    %v608 = vld [vmem:[%s9] sm:$0x1]
    %v610 = vperm.slane %v608, 0
    %v616 = vunpack.c.l.b16 %v604
    %v617 = vunpack.c.l.b16 %v605
    %v618 = vunpack.c.l.b16 %v606
    %v619 = vunpack.c.l.b16 %v607
    %v620 = vpack.c.b16 %v617, %v616
    %v621 = vpack.c.b16 %v619, %v618
    %v625 = vsel %vm371, %v596, 0
    %v628 = vsel %vm371, %v597, 0
    %v631 = vsel %vm371, %v598, 0
    %v634 = vsel %vm371, %v599, 0
    %v637 = vsel %vm371, %v600, 0
    %v640 = vsel %vm371, %v601, 0
    %v643 = vsel %vm371, %v602, 0
    %v646 = vsel %vm371, %v603, 0
    %648 = vmatpush.bf16.msra.mxu0 0
    %649 = vmatpush.bf16.msra.mxu0 0
    %650 = vmatpush.bf16.msra.mxu0 0
    %651 = vmatpush.bf16.msra.mxu0 0
    %652 = vmatpush.bf16.msra.mxu0 0
    %653 = vmatpush.bf16.msra.mxu0 0
    %654 = vmatpush.bf16.msra.mxu0 %v621
    %655 = vmatpush.bf16.msra.mxu0 %v620
    %656 = vmatmul.bf16.gmra.mxu0 %v625
    %v657 = vpop.f32.mrf.mxu0
    %v658 = vadd.f32 %v610, %v657
    %v659 = vpop.f32.mrf.mxu0
    %v660 = vadd.f32 %v610, %v659
    %661 = vmatmul.bf16.gmra.mxu0 %v628
    %v662 = vpop.f32.mrf.mxu0
    %v663 = vadd.f32 %v610, %v662
    %v664 = vpop.f32.mrf.mxu0
    %v665 = vadd.f32 %v610, %v664
    %666 = vmatmul.bf16.gmra.mxu0 %v631
    %v667 = vpop.f32.mrf.mxu0
    %v668 = vadd.f32 %v610, %v667
    %v669 = vpop.f32.mrf.mxu0
    %v670 = vadd.f32 %v610, %v669
    %671 = vmatmul.bf16.gmra.mxu0 %v634
    %v672 = vpop.f32.mrf.mxu0
    %v673 = vadd.f32 %v610, %v672
    %v674 = vpop.f32.mrf.mxu0
    %v675 = vadd.f32 %v610, %v674
    %676 = vmatmul.bf16.gmra.mxu0 %v637
    %v677 = vpop.f32.mrf.mxu0
    %v678 = vadd.f32 %v610, %v677
    %v679 = vpop.f32.mrf.mxu0
    %v680 = vadd.f32 %v610, %v679
    %681 = vmatmul.bf16.gmra.mxu0 %v640
    %v682 = vpop.f32.mrf.mxu0
    %v683 = vadd.f32 %v610, %v682
    %v684 = vpop.f32.mrf.mxu0
    %v685 = vadd.f32 %v610, %v684
    %686 = vmatmul.bf16.gmra.mxu0 %v643
    %v687 = vpop.f32.mrf.mxu0
    %v688 = vadd.f32 %v610, %v687
    %v689 = vpop.f32.mrf.mxu0
    %v690 = vadd.f32 %v610, %v689
    %691 = vmatmul.bf16.gmra.mxu0 %v646
    %v692 = vpop.f32.mrf.mxu0
    %v693 = vadd.f32 %v610, %v692
    %v694 = vpop.f32.mrf.mxu0
    %v695 = vadd.f32 %v610, %v694
    %696 = vdwg.mxu0
    %697 = vst [vmem:[%s10] sm:$0xff] %v658
    %698 = vst [vmem:[%s10 + $0x8] sm:$0xff] %v660
    %699 = vst [vmem:[%s10 + $0x10] sm:$0xff] %v663
    %700 = vst [vmem:[%s10 + $0x18] sm:$0xff] %v665
    %701 = vst [vmem:[%s10 + $0x20] sm:$0xff] %v668
    %702 = vst [vmem:[%s10 + $0x28] sm:$0xff] %v670
    %703 = vst [vmem:[%s10 + $0x30] sm:$0xff] %v673
    %704 = vst [vmem:[%s10 + $0x38] sm:$0xff] %v675
    %705 = vst [vmem:[%s10 + $0x40] sm:$0xff] %v678
    %706 = vst [vmem:[%s10 + $0x48] sm:$0xff] %v680
    %707 = vst [vmem:[%s10 + $0x50] sm:$0xff] %v683
    %708 = vst [vmem:[%s10 + $0x58] sm:$0xff] %v685
    %709 = vst [vmem:[%s10 + $0x60] sm:$0xff] %v688
    %710 = vst [vmem:[%s10 + $0x68] sm:$0xff] %v690
    %711 = vst [vmem:[%s10 + $0x70] sm:$0xff] %v693
    %712 = vst [vmem:[%s10 + $0x78] sm:$0xff] %v695
  $region49: #{gcn_v_forward.1} parent=0 // pred_fallthru
    _
  // Predicated region
  $region50: #{gcn_v_forward.1} parent=0 // pred_check
    _
  $region51: #{gcn_v_forward.1} parent=0 // pred_check_branch
    %714 = sbr.rel (0) target = $region53
  $region52: #{gcn_v_forward.1} parent=0 // pred_region
    _
  $region53: #{gcn_v_forward.1} parent=0 // pred_fallthru
    _
  // Predicated region
  $region54: #{gcn_v_forward.1} parent=0 // pred_check
    _
  $region55: #{gcn_v_forward.1} parent=0 // pred_check_branch
    %716 = sbr.rel (0) target = $region57
  $region56: #{gcn_v_forward.1} parent=0 // pred_region
    _
  $region57: #{gcn_v_forward.1} parent=0 // pred_fallthru
    _

</llo_original>
